<compile_context>
chip_gen: v7x
topology: tpu7x:2x2x1
jax: 0.10.0
libtpu: 0.0.40
codegen_flags: <defaults>
</compile_context>

<pallas_src>
import jax
import jax.numpy as jnp
from jax.experimental import pallas as pl
from jax.experimental.pallas import tpu as pltpu

LANE = 128
SUBLANE = 8


def _round_up(n, m):
    return ((n + m - 1) // m) * m


def dqn_kernel(x_ref, w1_ref, b1_ref, w2_ref, b2_ref, w3_ref, b3_ref, out_ref):
    # x arrives as bf16 (halved HBM stream); matmuls accumulate in f32; the hidden
    # activations stay f32 (they never touch HBM and f32 MXU passes are free in an
    # HBM-bound kernel), bias add + ReLU stay f32 on the VPU.
    h = jnp.dot(x_ref[...], w1_ref[...], preferred_element_type=jnp.float32)
    h = jnp.maximum(h + b1_ref[...], 0.0)

    o = jnp.dot(h, w2_ref[...].astype(jnp.float32), preferred_element_type=jnp.float32)
    o = jnp.maximum(o + b2_ref[...], 0.0)

    a = jnp.dot(o, w3_ref[...].astype(jnp.float32), preferred_element_type=jnp.float32)
    out_ref[...] = (a + b3_ref[...]).astype(out_ref.dtype)


def init_params(key, in_dim, hidden_dim, out_dim, n_actions):
    """PyTorch nn.Linear-style init (uniform +/- 1/sqrt(fan_in)), unpadded f32."""
    ks = jax.random.split(key, 6)

    def linear(kw, kb, fan_in, fan_out):
        bound = 1.0 / jnp.sqrt(fan_in)
        w = jax.random.uniform(kw, (fan_in, fan_out), jnp.float32, -bound, bound)
        b = jax.random.uniform(kb, (1, fan_out), jnp.float32, -bound, bound)
        return w, b

    w1, b1 = linear(ks[0], ks[1], in_dim, hidden_dim)
    w2, b2 = linear(ks[2], ks[3], hidden_dim, out_dim)
    w3, b3 = linear(ks[4], ks[5], out_dim, n_actions)
    return {"w1": w1, "b1": b1, "w2": w2, "b2": b2, "w3": w3, "b3": b3}


def prepare_params(params):
    """Lane-pad feature dims to 128 and cast weights to bf16; biases stay f32.

    w1 keeps its UNpadded contraction dim so the x stream is read without feature
    padding (in_dim=16 is exactly one bf16 sublane tile).
    """
    def pad_w(w, pad_rows):
        fi, fo = w.shape
        rows = _round_up(fi, LANE) if pad_rows else fi
        wp = jnp.zeros((rows, _round_up(fo, LANE)), jnp.float32)
        return wp.at[:fi, :fo].set(w).astype(jnp.bfloat16)

    def pad_b(b):
        fo = b.shape[-1]
        bp = jnp.zeros((1, _round_up(fo, LANE)), jnp.float32)
        return bp.at[:, :fo].set(b.reshape(1, -1))

    return {
        "w1": pad_w(params["w1"], pad_rows=False), "b1": pad_b(params["b1"]),
        "w2": pad_w(params["w2"], pad_rows=True),  "b2": pad_b(params["b2"]),
        "w3": pad_w(params["w3"], pad_rows=True),  "b3": pad_b(params["b3"]),
    }


def dqn_forward(state, pparams, n_actions, tile_b=4096):
    """state: (B, in_dim) float. pparams from prepare_params. Returns (B, n_actions) f32."""
    B, in_dim = state.shape
    assert pparams["w1"].shape[0] == in_dim
    HID_PAD = pparams["w1"].shape[1]
    OUT_PAD = pparams["w2"].shape[1]
    ACT_PAD = pparams["w3"].shape[1]

    # Batch tiling: round to sublanes; when the batch is big enough, prefer >= 2 grid
    # steps so the "parallel" axis can shard across v7x's 2 TensorCores.
    B_sub = _round_up(B, SUBLANE)
    if B_sub > SUBLANE:
        half = _round_up((B_sub + 1) // 2, SUBLANE)
        tile_b = max(SUBLANE, min(tile_b, half))
    else:
        tile_b = SUBLANE
    B_pad = _round_up(B_sub, tile_b)

    # Stream x as bf16, un-padded along features; only the batch dim is zero-padded.
    x = state.astype(jnp.bfloat16)
    if B_pad != B:
        x = jnp.pad(x, ((0, B_pad - B), (0, 0)))

    grid = (B_pad // tile_b,)
    const = lambda shape: pl.BlockSpec(shape, lambda i: (0, 0))  # VMEM-resident weights

    flops = 2 * B_pad * (in_dim * HID_PAD + HID_PAD * OUT_PAD + OUT_PAD * ACT_PAD)
    weight_bytes = sum(int(v.size) * v.dtype.itemsize for v in pparams.values())
    bytes_accessed = B_pad * in_dim * 2 + B_pad * ACT_PAD * 2 + weight_bytes

    out = pl.pallas_call(
        dqn_kernel,
        out_shape=jax.ShapeDtypeStruct((B_pad, ACT_PAD), jnp.bfloat16),
        grid=grid,
        in_specs=[
            pl.BlockSpec((tile_b, in_dim), lambda i: (i, 0)),
            const((in_dim, HID_PAD)), const((1, HID_PAD)),
            const((HID_PAD, OUT_PAD)), const((1, OUT_PAD)),
            const((OUT_PAD, ACT_PAD)), const((1, ACT_PAD)),
        ],
        out_specs=pl.BlockSpec((tile_b, ACT_PAD), lambda i: (i, 0)),
        compiler_params=pltpu.CompilerParams(
            dimension_semantics=("parallel",),
            # ~10 MiB working set at tile_b=4096; lift the limit so larger user tiles
            # still compile on v5e's 16 MiB default scoped VMEM.
            vmem_limit_bytes=32 * 1024 * 1024,
        ),
        cost_estimate=pl.CostEstimate(
            flops=flops, transcendentals=0, bytes_accessed=int(bytes_accessed)),
    )(x, pparams["w1"], pparams["b1"], pparams["w2"], pparams["b2"],
      pparams["w3"], pparams["b3"])

    # Lane-dense bf16 writeback; slice to the real action count and cast at the consumer.
    return out[:B, :n_actions].astype(jnp.float32)


if __name__ == "__main__":
    key = jax.random.PRNGKey(0)
    k_param, k_state = jax.random.split(key)

    # DeepQNetwork(input_dims=(16,), hidden_layer_dims=32, output_layer_dims=32, n_actions=8)
    batch, in_dim, hidden_dim, out_dim, n_actions = 8, 16, 32, 32, 8

    params = init_params(k_param, in_dim, hidden_dim, out_dim, n_actions)
    pparams = prepare_params(params)
    state = jax.random.normal(k_state, (batch, in_dim), jnp.float32)

    actions = dqn_forward(state, pparams, n_actions)
    actions = jax.block_until_ready(actions)
    assert actions.shape == (batch, n_actions)
    assert actions.dtype == jnp.float32

    # Reference with matched quantization (bf16 x / weights, f32 math, bf16 output).
    def q(a):
        return a.astype(jnp.bfloat16).astype(jnp.float32)

    ref = jnp.maximum(q(state) @ q(params["w1"]) + params["b1"], 0.0)
    ref = jnp.maximum(ref @ q(params["w2"]) + params["b2"], 0.0)
    ref = ref @ q(params["w3"]) + params["b3"]
    ref = ref.astype(jnp.bfloat16).astype(jnp.float32)
    assert jnp.allclose(actions, ref, atol=3e-2, rtol=3e-2)

    # Loose sanity check against full-f32 math (bf16 input/weights/output lose a few bits).
    f32 = jnp.maximum(state @ params["w1"] + params["b1"], 0.0)
    f32 = jnp.maximum(f32 @ params["w2"] + params["b2"], 0.0)
    f32 = f32 @ params["w3"] + params["b3"]
    assert jnp.allclose(actions, f32, atol=5e-2, rtol=5e-2)

    print("KERNEL_OK")
</pallas_src>

<mosaic_0001>
module attributes {stable_mosaic.version = 11 : i64} {
  func.func @dqn_kernel(%arg0: i32, %arg1: memref<8x16xbf16, #tpu.memory_space<vmem>>, %arg2: memref<16x128xbf16, #tpu.memory_space<vmem>>, %arg3: memref<1x128xf32, #tpu.memory_space<vmem>>, %arg4: memref<128x128xbf16, #tpu.memory_space<vmem>>, %arg5: memref<1x128xf32, #tpu.memory_space<vmem>>, %arg6: memref<128x128xbf16, #tpu.memory_space<vmem>>, %arg7: memref<1x128xf32, #tpu.memory_space<vmem>>, %arg8: memref<8x128xbf16, #tpu.memory_space<vmem>>) attributes {dimension_semantics = [#tpu.dimension_semantics<parallel>], iteration_bounds = array<i64: 1>, scalar_prefetch = 0 : i64, scratch_operands = 0 : i64, tpu.core_type = #tpu.core_type<tc>, window_params = [{transform_indices = @transform_0, window_bounds = array<i64: 8, 16>}, {pipeline_mode = #tpu.pipeline_mode<synchronous>, transform_indices = @transform_1, window_bounds = array<i64: 16, 128>}, {pipeline_mode = #tpu.pipeline_mode<synchronous>, transform_indices = @transform_2, window_bounds = array<i64: 1, 128>}, {pipeline_mode = #tpu.pipeline_mode<synchronous>, transform_indices = @transform_3, window_bounds = array<i64: 128, 128>}, {pipeline_mode = #tpu.pipeline_mode<synchronous>, transform_indices = @transform_4, window_bounds = array<i64: 1, 128>}, {pipeline_mode = #tpu.pipeline_mode<synchronous>, transform_indices = @transform_5, window_bounds = array<i64: 128, 128>}, {pipeline_mode = #tpu.pipeline_mode<synchronous>, transform_indices = @transform_6, window_bounds = array<i64: 1, 128>}, {transform_indices = @transform_7, window_bounds = array<i64: 8, 128>}]} {
    %c0 = arith.constant 0 : index
    %c0_0 = arith.constant 0 : index
    %0 = vector.load %arg1[%c0, %c0_0] : memref<8x16xbf16, #tpu.memory_space<vmem>>, vector<8x16xbf16>
    %c0_1 = arith.constant 0 : index
    %c0_2 = arith.constant 0 : index
    %1 = vector.load %arg2[%c0_1, %c0_2] : memref<16x128xbf16, #tpu.memory_space<vmem>>, vector<16x128xbf16>
    %cst = arith.constant dense<0.000000e+00> : vector<8x128xf32>
    %2 = tpu.matmul %0, %1, %cst {dimension_numbers = #tpu.dot_dimension_numbers<[1], [0], [0], [1], [0, 0, 1, 1], [], []>} : vector<8x16xbf16>, vector<16x128xbf16>, vector<8x128xf32> -> vector<8x128xf32>
    %c0_3 = arith.constant 0 : index
    %c0_4 = arith.constant 0 : index
    %3 = vector.load %arg3[%c0_3, %c0_4] : memref<1x128xf32, #tpu.memory_space<vmem>>, vector<1x128xf32>
    %4 = vector.broadcast %3 : vector<1x128xf32> to vector<8x128xf32>
    %5 = arith.addf %2, %4 : vector<8x128xf32>
    %cst_5 = arith.constant 0.000000e+00 : f32
    %6 = vector.broadcast %cst_5 : f32 to vector<8x128xf32>
    %7 = arith.maximumf %5, %6 : vector<8x128xf32>
    %c0_6 = arith.constant 0 : index
    %c0_7 = arith.constant 0 : index
    %8 = vector.load %arg4[%c0_6, %c0_7] : memref<128x128xbf16, #tpu.memory_space<vmem>>, vector<128x128xbf16>
    %9 = arith.extf %8 : vector<128x128xbf16> to vector<128x128xf32>
    %cst_8 = arith.constant dense<0.000000e+00> : vector<8x128xf32>
    %10 = tpu.matmul %7, %9, %cst_8 {dimension_numbers = #tpu.dot_dimension_numbers<[1], [0], [0], [1], [0, 0, 1, 1], [], []>} : vector<8x128xf32>, vector<128x128xf32>, vector<8x128xf32> -> vector<8x128xf32>
    %c0_9 = arith.constant 0 : index
    %c0_10 = arith.constant 0 : index
    %11 = vector.load %arg5[%c0_9, %c0_10] : memref<1x128xf32, #tpu.memory_space<vmem>>, vector<1x128xf32>
    %12 = vector.broadcast %11 : vector<1x128xf32> to vector<8x128xf32>
    %13 = arith.addf %10, %12 : vector<8x128xf32>
    %cst_11 = arith.constant 0.000000e+00 : f32
    %14 = vector.broadcast %cst_11 : f32 to vector<8x128xf32>
    %15 = arith.maximumf %13, %14 : vector<8x128xf32>
    %c0_12 = arith.constant 0 : index
    %c0_13 = arith.constant 0 : index
    %16 = vector.load %arg6[%c0_12, %c0_13] : memref<128x128xbf16, #tpu.memory_space<vmem>>, vector<128x128xbf16>
    %17 = arith.extf %16 : vector<128x128xbf16> to vector<128x128xf32>
    %cst_14 = arith.constant dense<0.000000e+00> : vector<8x128xf32>
    %18 = tpu.matmul %15, %17, %cst_14 {dimension_numbers = #tpu.dot_dimension_numbers<[1], [0], [0], [1], [0, 0, 1, 1], [], []>} : vector<8x128xf32>, vector<128x128xf32>, vector<8x128xf32> -> vector<8x128xf32>
    %c0_15 = arith.constant 0 : index
    %c0_16 = arith.constant 0 : index
    %19 = vector.load %arg7[%c0_15, %c0_16] : memref<1x128xf32, #tpu.memory_space<vmem>>, vector<1x128xf32>
    %20 = vector.broadcast %19 : vector<1x128xf32> to vector<8x128xf32>
    %21 = arith.addf %18, %20 : vector<8x128xf32>
    %22 = arith.truncf %21 : vector<8x128xf32> to vector<8x128xbf16>
    %c0_17 = arith.constant 0 : index
    %c0_18 = arith.constant 0 : index
    %23 = vector.load %arg8[%c0_17, %c0_18] : memref<8x128xbf16, #tpu.memory_space<vmem>>, vector<8x128xbf16>
    tpu.vector_store %arg8[%c0_17, %c0_18], %22 {strides = array<i32>} : memref<8x128xbf16, #tpu.memory_space<vmem>>, vector<8x128xbf16>,
    return
  }
  func.func @transform_0(%arg0: i32) -> (i32, i32) {
    %c0_i32 = arith.constant 0 : i32
    %c0_i32_0 = arith.constant 0 : i32
    return %arg0, %c0_i32 : i32, i32
  }
  func.func @transform_1(%arg0: i32) -> (i32, i32) {
    %c0_i32 = arith.constant 0 : i32
    %c0_i32_0 = arith.constant 0 : i32
    %c0_i32_1 = arith.constant 0 : i32
    return %c0_i32, %c0_i32_0 : i32, i32
  }
  func.func @transform_2(%arg0: i32) -> (i32, i32) {
    %c0_i32 = arith.constant 0 : i32
    %c0_i32_0 = arith.constant 0 : i32
    %c0_i32_1 = arith.constant 0 : i32
    return %c0_i32, %c0_i32_0 : i32, i32
  }
  func.func @transform_3(%arg0: i32) -> (i32, i32) {
    %c0_i32 = arith.constant 0 : i32
    %c0_i32_0 = arith.constant 0 : i32
    %c0_i32_1 = arith.constant 0 : i32
    return %c0_i32, %c0_i32_0 : i32, i32
  }
  func.func @transform_4(%arg0: i32) -> (i32, i32) {
    %c0_i32 = arith.constant 0 : i32
    %c0_i32_0 = arith.constant 0 : i32
    %c0_i32_1 = arith.constant 0 : i32
    return %c0_i32, %c0_i32_0 : i32, i32
  }
  func.func @transform_5(%arg0: i32) -> (i32, i32) {
    %c0_i32 = arith.constant 0 : i32
    %c0_i32_0 = arith.constant 0 : i32
    %c0_i32_1 = arith.constant 0 : i32
    return %c0_i32, %c0_i32_0 : i32, i32
  }
  func.func @transform_6(%arg0: i32) -> (i32, i32) {
    %c0_i32 = arith.constant 0 : i32
    %c0_i32_0 = arith.constant 0 : i32
    %c0_i32_1 = arith.constant 0 : i32
    return %c0_i32, %c0_i32_0 : i32, i32
  }
  func.func @transform_7(%arg0: i32) -> (i32, i32) {
    %c0_i32 = arith.constant 0 : i32
    %c0_i32_0 = arith.constant 0 : i32
    return %arg0, %c0_i32 : i32, i32
  }
}

</mosaic_0001>

<llo_original>
// kernel: tpu_custom_call.1
$region0: #{tpu_custom_call.1}
  #allocation0 [shape = 'u32[]', space=smem, size = 0x4, offset = 0x4, fixed_abs, tag = 'smem constant byte address 0x4 - core index']
  #allocation1 [shape = 'u32[144,128]{1,0:T(1,128)}', space=vmem, size = 0x12000, scoped, tag = 'internal scratch']
  %s0 = inlined_call_operand.hbm [shape: bf16[8,16], index: 0, kind: input, shape index: {}]
  %s1 = inlined_call_operand.hbm [shape: bf16[16,128], index: 1, kind: input, shape index: {}]
  %s2 = inlined_call_operand.vmem [shape: f32[1,128], index: 2, kind: input, shape index: {}]
  %s3 = inlined_call_operand.hbm [shape: bf16[128,128], index: 3, kind: input, shape index: {}]
  %s4 = inlined_call_operand.vmem [shape: f32[1,128], index: 4, kind: input, shape index: {}]
  %s5 = inlined_call_operand.hbm [shape: bf16[128,128], index: 5, kind: input, shape index: {}]
  %s6 = inlined_call_operand.vmem [shape: f32[1,128], index: 6, kind: input, shape index: {}]
  %s7 = inlined_call_operand.hbm [shape: bf16[8,128], index: 7, kind: output, shape index: {}]
  %s8 = sld [smem:[#allocation0]]
  $region54: #{tpu_custom_call.1} parent=0
    _
  %s10 = ssub.s32 1, %s8
  %s11 = scalar_select 0, %s10, %s8
  $region1: #{tpu_custom_call.1} parent=0
    #allocation2 [shape = 'u8[2048]{0}', space=vmem, size = 0x800, scoped, tag = 'input window, operand 0, single buffered']
    #allocation3 [shape = 's32[1]{0}', space=sflag, size = 0x4, scoped, tag = 'scoped memory for tpu_custom_call.1']
    #allocation4 [shape = 's32[1]{0}', space=sflag, size = 0x4, scoped, tag = 'scoped memory for tpu_custom_call.1']
    #allocation5 [shape = 'u8[4096]{0}', space=vmem, size = 0x1000, scoped, tag = 'input window, operand 1, single buffered']
    #allocation6 [shape = 's32[1]{0}', space=sflag, size = 0x4, scoped, tag = 'scoped memory for tpu_custom_call.1']
    #allocation7 [shape = 'u8[32768]{0}', space=vmem, size = 0x8000, scoped, tag = 'input window, operand 3, single buffered']
    #allocation8 [shape = 'u8[32768]{0}', space=vmem, size = 0x8000, scoped, tag = 'input window, operand 5, single buffered']
    #allocation9 [shape = 's32[1]{0}', space=sflag, size = 0x4, scoped, tag = 'scoped memory for tpu_custom_call.1']
    #allocation10 [shape = 'u8[2048]{0}', space=vmem, size = 0x800, scoped, tag = 'output window, operand 0, single buffered']
    %12 = vsyncpa [#allocation3], 0
    %13 = vsyncpa [#allocation6], 0
    %14 = vsyncpa [#allocation9], 0
    %15 = vsyncpa [#allocation4], 0
    // Predicated region
    $region2: #{tpu_custom_call.1} parent=1 // pred_check
      _
    $region3: #{tpu_custom_call.1} parent=1 // pred_check_branch
      %17 = sbr.rel (0) target = $region5
    $region4: #{tpu_custom_call.1} parent=1 // pred_region
      %s19 = ssub.s32 64, 64
      %20 = vsyncadd [#allocation3], %s19
      %s22 = sshll.u32 [#allocation2], 4
      %s23 = int_to_ptr.vmem [resolvable:$true] %s22
      %25 = dma.hbm_to_vmem [thread:$0]  %s0, 64, %s23, [#allocation3]
    $region5: #{tpu_custom_call.1} parent=1 // pred_fallthru
      _
    // Predicated region
    $region6: #{tpu_custom_call.1} parent=1 // pred_check
      _
    $region7: #{tpu_custom_call.1} parent=1 // pred_check_branch
      %27 = sbr.rel (0) target = $region9
    $region8: #{tpu_custom_call.1} parent=1 // pred_region
      %s29 = ssub.s32 128, 128
      %30 = vsyncadd [#allocation6], %s29
      %s31 = sshll.u32 [#allocation5], 4
      %s32 = int_to_ptr.vmem [resolvable:$true] %s31
      %37 = dma.hbm_to_vmem [thread:$0]  %s1, 128, %s32, [#allocation6], 64, 64, 4
    $region9: #{tpu_custom_call.1} parent=1 // pred_fallthru
      _
    // Predicated region
    $region10: #{tpu_custom_call.1} parent=1 // pred_check
      _
    $region11: #{tpu_custom_call.1} parent=1 // pred_check_branch
      %39 = sbr.rel (0) target = $region13
    $region12: #{tpu_custom_call.1} parent=1 // pred_region
      _
    $region13: #{tpu_custom_call.1} parent=1 // pred_fallthru
      _
    // Predicated region
    $region14: #{tpu_custom_call.1} parent=1 // pred_check
      _
    $region15: #{tpu_custom_call.1} parent=1 // pred_check_branch
      %41 = sbr.rel (0) target = $region17
    $region16: #{tpu_custom_call.1} parent=1 // pred_region
      %s43 = ssub.s32 1024, 1024
      %44 = vsyncadd [#allocation6], %s43
      %s45 = sshll.u32 [#allocation7], 4
      %s46 = int_to_ptr.vmem [resolvable:$true] %s45
      %51 = dma.hbm_to_vmem [thread:$0]  %s3, 1024, %s46, [#allocation6], 64, 64, 4
    $region17: #{tpu_custom_call.1} parent=1 // pred_fallthru
      _
    // Predicated region
    $region18: #{tpu_custom_call.1} parent=1 // pred_check
      _
    $region19: #{tpu_custom_call.1} parent=1 // pred_check_branch
      %53 = sbr.rel (0) target = $region21
    $region20: #{tpu_custom_call.1} parent=1 // pred_region
      _
    $region21: #{tpu_custom_call.1} parent=1 // pred_fallthru
      _
    // Predicated region
    $region22: #{tpu_custom_call.1} parent=1 // pred_check
      _
    $region23: #{tpu_custom_call.1} parent=1 // pred_check_branch
      %55 = sbr.rel (0) target = $region25
    $region24: #{tpu_custom_call.1} parent=1 // pred_region
      %s57 = ssub.s32 1024, 1024
      %58 = vsyncadd [#allocation9], %s57
      %s59 = sshll.u32 [#allocation8], 4
      %s60 = int_to_ptr.vmem [resolvable:$true] %s59
      %65 = dma.hbm_to_vmem [thread:$0]  %s5, 1024, %s60, [#allocation9], 64, 64, 4
    $region25: #{tpu_custom_call.1} parent=1 // pred_fallthru
      _
    // Predicated region
    $region26: #{tpu_custom_call.1} parent=1 // pred_check
      _
    $region27: #{tpu_custom_call.1} parent=1 // pred_check_branch
      %67 = sbr.rel (0) target = $region29
    $region28: #{tpu_custom_call.1} parent=1 // pred_region
      _
    $region29: #{tpu_custom_call.1} parent=1 // pred_fallthru
      _
    // Predicated region
    $region30: #{tpu_custom_call.1} parent=1 // pred_check
      _
    $region31: #{tpu_custom_call.1} parent=1 // pred_check_branch
      %69 = sbr.rel (0) target = $region33
    $region32: #{tpu_custom_call.1} parent=1 // pred_region
      %70 = dma.done [#allocation3], 64
    $region33: #{tpu_custom_call.1} parent=1 // pred_fallthru
      _
    // Predicated region
    $region34: #{tpu_custom_call.1} parent=1 // pred_check
      _
    $region35: #{tpu_custom_call.1} parent=1 // pred_check_branch
      %72 = sbr.rel (0) target = $region37
    $region36: #{tpu_custom_call.1} parent=1 // pred_region
      %73 = dma.done [#allocation6], 128
    $region37: #{tpu_custom_call.1} parent=1 // pred_fallthru
      _
    // Predicated region
    $region38: #{tpu_custom_call.1} parent=1 // pred_check
      _
    $region39: #{tpu_custom_call.1} parent=1 // pred_check_branch
      %75 = sbr.rel (0) target = $region41
    $region40: #{tpu_custom_call.1} parent=1 // pred_region
      %76 = dma.done [#allocation6], 1024
    $region41: #{tpu_custom_call.1} parent=1 // pred_fallthru
      _
    // Predicated region
    $region42: #{tpu_custom_call.1} parent=1 // pred_check
      _
    $region43: #{tpu_custom_call.1} parent=1 // pred_check_branch
      %78 = sbr.rel (0) target = $region45
    $region44: #{tpu_custom_call.1} parent=1 // pred_region
      %79 = dma.done [#allocation9], 1024
    $region45: #{tpu_custom_call.1} parent=1 // pred_fallthru
      _
    %v81 = vld [vmem:[#allocation2] sm:$0xf]
    %v82 = vld [vmem:[#allocation5] sm:$0xf]
    %v83 = vld [vmem:[#allocation5 + $0x4] sm:$0xf]
    %v84 = vld [vmem:[%s2] sm:$0x1]
    %v86 = vlaneseq
    %v87 = vshrl.u32 %v86, 7
    %v88 = vsub.s32 0, %v87
    %v89 = vrot.slane %v84, %v88
    %v93 = vunpack.c.l.b16 %v82
    %v94 = vunpack.c.l.b16 %v83
    %v95 = vpack.c.b16 %v94, %v93
    %vm97 = vcmask 130048
    %v99 = vsel %vm97, %v81, 0
    %101 = vmatprep.subr.bf16.mxu0 0
    %102 = vmatpush1.bf16.msra.mxu0 %v95
    %103 = vmatprep.subr.bf16.mxu0 0
    %104 = vmatpush1.bf16.msra.mxu0 0
    %105 = vmatprep.subr.bf16.mxu0 0
    %106 = vmatpush1.bf16.msra.mxu0 0
    %107 = vmatprep.subr.bf16.mxu0 0
    %108 = vmatpush1.bf16.msra.mxu0 0
    %109 = vmatprep.subr.bf16.mxu0 0
    %110 = vmatpush1.bf16.msra.mxu0 0
    %111 = vmatprep.subr.bf16.mxu0 0
    %112 = vmatpush1.bf16.msra.mxu0 0
    %113 = vmatprep.subr.bf16.mxu0 0
    %114 = vmatpush1.bf16.msra.mxu0 0
    %115 = vmatprep.subr.bf16.mxu0 0
    %116 = vmatpush1.bf16.msra.mxu0 0
    %117 = vmatprep.subr.bf16.mxu0 0
    %118 = vmatpush1.bf16.msra.mxu0 0
    %119 = vmatprep.subr.bf16.mxu0 0
    %120 = vmatpush1.bf16.msra.mxu0 0
    %121 = vmatprep.subr.bf16.mxu0 0
    %122 = vmatpush1.bf16.msra.mxu0 0
    %123 = vmatprep.subr.bf16.mxu0 0
    %124 = vmatpush1.bf16.msra.mxu0 0
    %125 = vmatprep.subr.bf16.mxu0 0
    %126 = vmatpush1.bf16.msra.mxu0 0
    %127 = vmatprep.subr.bf16.mxu0 0
    %128 = vmatpush1.bf16.msra.mxu0 0
    %129 = vmatprep.subr.bf16.mxu0 0
    %130 = vmatpush1.bf16.msra.mxu0 0
    %131 = vmatprep.subr.bf16.mxu0 0
    %132 = vmatpush1.bf16.msra.mxu0 0
    %133 = vmatprep.mubr.bf16.mxu0 0
    %134 = vmatmul.mubr.bf16.gmra.mrb[0].mxu0 %v99
    %v135 = vpop.f32.mrb[0].mxu0
    %v136 = vadd.f32 %v89, %v135
    %v137 = vpop.f32.mrb[0].mxu0
    %v138 = vpop.f32.mrb[0].mxu0
    %v139 = vpop.f32.mrb[0].mxu0
    %140 = vdwg.mxu0
    %v141 = vmax.f32 %v136, 0.0
    %v142 = vld [vmem:[#allocation7] sm:$0xf]
    %v143 = vld [vmem:[#allocation7 + $0x4] sm:$0xf]
    %v144 = vld [vmem:[#allocation7 + $0x8] sm:$0xf]
    %v145 = vld [vmem:[#allocation7 + $0xc] sm:$0xf]
    %v146 = vld [vmem:[#allocation7 + $0x10] sm:$0xf]
    %v147 = vld [vmem:[#allocation7 + $0x14] sm:$0xf]
    %v148 = vld [vmem:[#allocation7 + $0x18] sm:$0xf]
    %v149 = vld [vmem:[#allocation7 + $0x1c] sm:$0xf]
    %v150 = vld [vmem:[#allocation7 + $0x20] sm:$0xf]
    %v151 = vld [vmem:[#allocation7 + $0x24] sm:$0xf]
    %v152 = vld [vmem:[#allocation7 + $0x28] sm:$0xf]
    %v153 = vld [vmem:[#allocation7 + $0x2c] sm:$0xf]
    %v154 = vld [vmem:[#allocation7 + $0x30] sm:$0xf]
    %v155 = vld [vmem:[#allocation7 + $0x34] sm:$0xf]
    %v156 = vld [vmem:[#allocation7 + $0x38] sm:$0xf]
    %v157 = vld [vmem:[#allocation7 + $0x3c] sm:$0xf]
    %v158 = vunpack.c.l.bf16 %v142
    %v159 = vunpack.c.l.bf16 %v143
    %v160 = vunpack.c.l.bf16 %v144
    %v161 = vunpack.c.l.bf16 %v145
    %v162 = vunpack.c.l.bf16 %v146
    %v163 = vunpack.c.l.bf16 %v147
    %v164 = vunpack.c.l.bf16 %v148
    %v165 = vunpack.c.l.bf16 %v149
    %v166 = vunpack.c.l.bf16 %v150
    %v167 = vunpack.c.l.bf16 %v151
    %v168 = vunpack.c.l.bf16 %v152
    %v169 = vunpack.c.l.bf16 %v153
    %v170 = vunpack.c.l.bf16 %v154
    %v171 = vunpack.c.l.bf16 %v155
    %v172 = vunpack.c.l.bf16 %v156
    %v173 = vunpack.c.l.bf16 %v157
    %v174 = vld [vmem:[%s4] sm:$0x1]
    %v176 = vlaneseq
    %v177 = vshrl.u32 %v176, 7
    %v178 = vsub.s32 0, %v177
    %v179 = vrot.slane %v174, %v178
    %181 = vmatprep.subr.mxu0 0.0
    %182 = vmatpush1.msra.mxu0 %v158
    %183 = vmatprep.subr.mxu0 0.0
    %184 = vmatpush1.msra.mxu0 %v159
    %185 = vmatprep.subr.mxu0 0.0
    %186 = vmatpush1.msra.mxu0 %v160
    %187 = vmatprep.subr.mxu0 0.0
    %188 = vmatpush1.msra.mxu0 %v161
    %189 = vmatprep.subr.mxu0 0.0
    %190 = vmatpush1.msra.mxu0 %v162
    %191 = vmatprep.subr.mxu0 0.0
    %192 = vmatpush1.msra.mxu0 %v163
    %193 = vmatprep.subr.mxu0 0.0
    %194 = vmatpush1.msra.mxu0 %v164
    %195 = vmatprep.subr.mxu0 0.0
    %196 = vmatpush1.msra.mxu0 %v165
    %197 = vmatprep.subr.mxu0 0.0
    %198 = vmatpush1.msra.mxu0 %v166
    %199 = vmatprep.subr.mxu0 0.0
    %200 = vmatpush1.msra.mxu0 %v167
    %201 = vmatprep.subr.mxu0 0.0
    %202 = vmatpush1.msra.mxu0 %v168
    %203 = vmatprep.subr.mxu0 0.0
    %204 = vmatpush1.msra.mxu0 %v169
    %205 = vmatprep.subr.mxu0 0.0
    %206 = vmatpush1.msra.mxu0 %v170
    %207 = vmatprep.subr.mxu0 0.0
    %208 = vmatpush1.msra.mxu0 %v171
    %209 = vmatprep.subr.mxu0 0.0
    %210 = vmatpush1.msra.mxu0 %v172
    %211 = vmatprep.subr.mxu0 0.0
    %212 = vmatpush1.msra.mxu0 %v173
    %213 = vmatprep.subr.mxu0 0.0
    %214 = vmatpush1.msra.mxu0 0.0
    %215 = vmatprep.subr.mxu0 0.0
    %216 = vmatpush1.msra.mxu0 0.0
    %217 = vmatprep.subr.mxu0 0.0
    %218 = vmatpush1.msra.mxu0 0.0
    %219 = vmatprep.subr.mxu0 0.0
    %220 = vmatpush1.msra.mxu0 0.0
    %221 = vmatprep.subr.mxu0 0.0
    %222 = vmatpush1.msra.mxu0 0.0
    %223 = vmatprep.subr.mxu0 0.0
    %224 = vmatpush1.msra.mxu0 0.0
    %225 = vmatprep.subr.mxu0 0.0
    %226 = vmatpush1.msra.mxu0 0.0
    %227 = vmatprep.subr.mxu0 0.0
    %228 = vmatpush1.msra.mxu0 0.0
    %229 = vmatprep.subr.mxu0 0.0
    %230 = vmatpush1.msra.mxu0 0.0
    %231 = vmatprep.subr.mxu0 0.0
    %232 = vmatpush1.msra.mxu0 0.0
    %233 = vmatprep.subr.mxu0 0.0
    %234 = vmatpush1.msra.mxu0 0.0
    %235 = vmatprep.subr.mxu0 0.0
    %236 = vmatpush1.msra.mxu0 0.0
    %237 = vmatprep.subr.mxu0 0.0
    %238 = vmatpush1.msra.mxu0 0.0
    %239 = vmatprep.subr.mxu0 0.0
    %240 = vmatpush1.msra.mxu0 0.0
    %241 = vmatprep.subr.mxu0 0.0
    %242 = vmatpush1.msra.mxu0 0.0
    %243 = vmatprep.subr.mxu0 0.0
    %244 = vmatpush1.msra.mxu0 0.0
    %245 = vmatprep.mubr.f32.mxu0 0.0
    %246 = vmatmul.mubr.f32.gmra.mrb[0].mxu0 %v141
    %v247 = vpop.f32.mrb[0].mxu0
    %v248 = vadd.f32 %v179, %v247
    %v249 = vpop.f32.mrb[0].mxu0
    %250 = vdwg.mxu0
    %v251 = vmax.f32 %v248, 0.0
    %v252 = vld [vmem:[#allocation8] sm:$0xf]
    %v253 = vld [vmem:[#allocation8 + $0x4] sm:$0xf]
    %v254 = vld [vmem:[#allocation8 + $0x8] sm:$0xf]
    %v255 = vld [vmem:[#allocation8 + $0xc] sm:$0xf]
    %v256 = vld [vmem:[#allocation8 + $0x10] sm:$0xf]
    %v257 = vld [vmem:[#allocation8 + $0x14] sm:$0xf]
    %v258 = vld [vmem:[#allocation8 + $0x18] sm:$0xf]
    %v259 = vld [vmem:[#allocation8 + $0x1c] sm:$0xf]
    %v260 = vld [vmem:[#allocation8 + $0x20] sm:$0xf]
    %v261 = vld [vmem:[#allocation8 + $0x24] sm:$0xf]
    %v262 = vld [vmem:[#allocation8 + $0x28] sm:$0xf]
    %v263 = vld [vmem:[#allocation8 + $0x2c] sm:$0xf]
    %v264 = vld [vmem:[#allocation8 + $0x30] sm:$0xf]
    %v265 = vld [vmem:[#allocation8 + $0x34] sm:$0xf]
    %v266 = vld [vmem:[#allocation8 + $0x38] sm:$0xf]
    %v267 = vld [vmem:[#allocation8 + $0x3c] sm:$0xf]
    %v268 = vunpack.c.l.bf16 %v252
    %v269 = vunpack.c.l.bf16 %v253
    %v270 = vunpack.c.l.bf16 %v254
    %v271 = vunpack.c.l.bf16 %v255
    %v272 = vunpack.c.l.bf16 %v256
    %v273 = vunpack.c.l.bf16 %v257
    %v274 = vunpack.c.l.bf16 %v258
    %v275 = vunpack.c.l.bf16 %v259
    %v276 = vunpack.c.l.bf16 %v260
    %v277 = vunpack.c.l.bf16 %v261
    %v278 = vunpack.c.l.bf16 %v262
    %v279 = vunpack.c.l.bf16 %v263
    %v280 = vunpack.c.l.bf16 %v264
    %v281 = vunpack.c.l.bf16 %v265
    %v282 = vunpack.c.l.bf16 %v266
    %v283 = vunpack.c.l.bf16 %v267
    %v284 = vld [vmem:[%s6] sm:$0x1]
    %v286 = vlaneseq
    %v287 = vshrl.u32 %v286, 7
    %v288 = vsub.s32 0, %v287
    %v289 = vrot.slane %v284, %v288
    %291 = vmatprep.subr.mxu0 0.0
    %292 = vmatpush1.msra.mxu0 %v268
    %293 = vmatprep.subr.mxu0 0.0
    %294 = vmatpush1.msra.mxu0 %v269
    %295 = vmatprep.subr.mxu0 0.0
    %296 = vmatpush1.msra.mxu0 %v270
    %297 = vmatprep.subr.mxu0 0.0
    %298 = vmatpush1.msra.mxu0 %v271
    %299 = vmatprep.subr.mxu0 0.0
    %300 = vmatpush1.msra.mxu0 %v272
    %301 = vmatprep.subr.mxu0 0.0
    %302 = vmatpush1.msra.mxu0 %v273
    %303 = vmatprep.subr.mxu0 0.0
    %304 = vmatpush1.msra.mxu0 %v274
    %305 = vmatprep.subr.mxu0 0.0
    %306 = vmatpush1.msra.mxu0 %v275
    %307 = vmatprep.subr.mxu0 0.0
    %308 = vmatpush1.msra.mxu0 %v276
    %309 = vmatprep.subr.mxu0 0.0
    %310 = vmatpush1.msra.mxu0 %v277
    %311 = vmatprep.subr.mxu0 0.0
    %312 = vmatpush1.msra.mxu0 %v278
    %313 = vmatprep.subr.mxu0 0.0
    %314 = vmatpush1.msra.mxu0 %v279
    %315 = vmatprep.subr.mxu0 0.0
    %316 = vmatpush1.msra.mxu0 %v280
    %317 = vmatprep.subr.mxu0 0.0
    %318 = vmatpush1.msra.mxu0 %v281
    %319 = vmatprep.subr.mxu0 0.0
    %320 = vmatpush1.msra.mxu0 %v282
    %321 = vmatprep.subr.mxu0 0.0
    %322 = vmatpush1.msra.mxu0 %v283
    %323 = vmatprep.subr.mxu0 0.0
    %324 = vmatpush1.msra.mxu0 0.0
    %325 = vmatprep.subr.mxu0 0.0
    %326 = vmatpush1.msra.mxu0 0.0
    %327 = vmatprep.subr.mxu0 0.0
    %328 = vmatpush1.msra.mxu0 0.0
    %329 = vmatprep.subr.mxu0 0.0
    %330 = vmatpush1.msra.mxu0 0.0
    %331 = vmatprep.subr.mxu0 0.0
    %332 = vmatpush1.msra.mxu0 0.0
    %333 = vmatprep.subr.mxu0 0.0
    %334 = vmatpush1.msra.mxu0 0.0
    %335 = vmatprep.subr.mxu0 0.0
    %336 = vmatpush1.msra.mxu0 0.0
    %337 = vmatprep.subr.mxu0 0.0
    %338 = vmatpush1.msra.mxu0 0.0
    %339 = vmatprep.subr.mxu0 0.0
    %340 = vmatpush1.msra.mxu0 0.0
    %341 = vmatprep.subr.mxu0 0.0
    %342 = vmatpush1.msra.mxu0 0.0
    %343 = vmatprep.subr.mxu0 0.0
    %344 = vmatpush1.msra.mxu0 0.0
    %345 = vmatprep.subr.mxu0 0.0
    %346 = vmatpush1.msra.mxu0 0.0
    %347 = vmatprep.subr.mxu0 0.0
    %348 = vmatpush1.msra.mxu0 0.0
    %349 = vmatprep.subr.mxu0 0.0
    %350 = vmatpush1.msra.mxu0 0.0
    %351 = vmatprep.subr.mxu0 0.0
    %352 = vmatpush1.msra.mxu0 0.0
    %353 = vmatprep.subr.mxu0 0.0
    %354 = vmatpush1.msra.mxu0 0.0
    %355 = vmatprep.mubr.f32.mxu0 0.0
    %356 = vmatmul.mubr.f32.gmra.mrb[0].mxu0 %v251
    %v357 = vpop.f32.mrb[0].mxu0
    %v358 = vadd.f32 %v289, %v357
    %v359 = vpop.f32.mrb[0].mxu0
    %360 = vdwg.mxu0
    %v361 = vpack.c.bf16 %v358, %v358
    %362 = vst [vmem:[#allocation10] sm:$0xf] %v361
    // Predicated region
    $region46: #{tpu_custom_call.1} parent=1 // pred_check
      _
    $region47: #{tpu_custom_call.1} parent=1 // pred_check_branch
      %364 = sbr.rel (0) target = $region49
    $region48: #{tpu_custom_call.1} parent=1 // pred_region
      %s366 = ssub.s32 64, 64
      %367 = vsyncadd [#allocation4], %s366
      %s369 = sshll.u32 [#allocation10], 4
      %s370 = int_to_ptr.vmem [resolvable:$true] %s369
      %372 = dma.vmem_to_hbm [thread:$0]  %s370, 64, %s7, [#allocation4]
    $region49: #{tpu_custom_call.1} parent=1 // pred_fallthru
      _
    // Predicated region
    $region50: #{tpu_custom_call.1} parent=1 // pred_check
      _
    $region51: #{tpu_custom_call.1} parent=1 // pred_check_branch
      %374 = sbr.rel (0) target = $region53
    $region52: #{tpu_custom_call.1} parent=1 // pred_region
      %375 = dma.done [#allocation4], 64
    $region53: #{tpu_custom_call.1} parent=1 // pred_fallthru
      _
    %376 = vsyncpa [#allocation3], 1
    %377 = vsyncpa [#allocation6], 1
    %378 = vsyncpa [#allocation9], 1
    %379 = vsyncpa [#allocation4], 1

</llo_original>
